<compile_context>
chip_gen: v7x
topology: tpu7x:2x2x1
jax: 0.10.0
libtpu: 0.0.40
codegen_flags: <defaults>
</compile_context>

<pallas_src>
import jax
import jax.numpy as jnp
import numpy as np
from jax import lax
from jax.experimental import pallas as pl
from jax.experimental.pallas import tpu as pltpu

# ---- synthetic model hyper-parameters (small shapes) ----
NUM_MODELS = 3
NUM_CLASSES = 6
TAB_DIM = 8          # tabular_input_dim
B = 2                # batch
S = 8                # text sequence length
VOCAB = 32
DT = 16              # text embedding dim
CIN, H, W = 3, 8, 8  # image: channels, height, width (NCHW at wrapper)
KH = KW = 3
CIMG = 8             # conv output channels
DTAB = 16            # tabular hidden dim
DFEAT = DT + CIMG + DTAB
HW = H * W
CK = CIN * KH * KW
OUT_PAD = 128        # lane-dense padded output width (classes live in lanes [0, NUM_CLASSES))


# ----------------------------- Pallas kernel (single invocation, no grid) -----------------------------
def _ensemble_kernel(temb_ref,       # [B*S, M*DT]      stacked token embeddings (all models)
                     tpool_ref,      # [B, B*S]         normalized-mask pooling matrix
                     patches_t_ref,  # [CK, B*HW]       im2col patches, transposed (lane = pixel)
                     ipool_ref,      # [B, B*HW]        global-average-pool matrix
                     cwt_ref,        # [M*CIMG, CK]     stacked conv weights (transposed)
                     cbt_ref,        # [M*CIMG, 1]      stacked conv bias
                     tab_ref,        # [B, TAB_DIM]
                     tw_ref,         # [TAB_DIM, M*DTAB]
                     tb_ref,         # [1, M*DTAB]
                     fw_ref,         # [M*DFEAT, OUT_PAD]  ens_w folded in, zero-padded lanes
                     fb_ref,         # [1, OUT_PAD]
                     out_ref):       # [B, OUT_PAD]
    # --- text branch (all models at once): masked mean pool == pooling-matrix matmul ---
    text_all = jnp.dot(tpool_ref[...], temb_ref[...],
                       preferred_element_type=jnp.float32)                 # [B, M*DT]

    # --- image branch, lane-dense: conv as W^T @ patches^T -> [M*CIMG, B*HW=128] ---
    conv_t = jnp.dot(cwt_ref[...], patches_t_ref[...],
                     preferred_element_type=jnp.float32) + cbt_ref[...]    # [M*CIMG, 128]
    conv_t = jnp.maximum(conv_t, 0.0)
    # global average pool: contract the pixel (lane) axis of both operands (trans_b matmul)
    img_all = lax.dot_general(ipool_ref[...], conv_t,
                              dimension_numbers=(((1,), (1,)), ((), ())),
                              preferred_element_type=jnp.float32)          # [B, M*CIMG]

    # --- tabular branch (all models at once) ---
    tab_all = jnp.maximum(
        jnp.dot(tab_ref[...], tw_ref[...], preferred_element_type=jnp.float32) + tb_ref[...],
        0.0)                                                               # [B, M*DTAB]

    # --- fused head: one matmul; ensemble weights already folded into fw/fb ---
    fused = jnp.concatenate([text_all, img_all, tab_all], axis=-1)         # [B, M*DFEAT]
    out_ref[...] = (jnp.dot(fused, fw_ref[...], preferred_element_type=jnp.float32)
                    + fb_ref[...])                                         # [B, OUT_PAD]


# ----------------------------- wrapper (glue + pallas_call) -----------------------------
def _im2col(images):
    """images: [B, CIN, H, W] NCHW -> patches [B*H*W, CIN*KH*KW] for a 3x3 'same' conv."""
    padded = jnp.pad(images, ((0, 0), (0, 0), (1, 1), (1, 1)))
    cols = [padded[:, :, ky:ky + H, kx:kx + W] for ky in range(KH) for kx in range(KW)]
    patches = jnp.stack(cols, axis=2)                       # [B, CIN, 9, H, W]
    patches = patches.transpose(0, 3, 4, 1, 2)              # [B, H, W, CIN, 9]
    return patches.reshape(B * HW, CK)


def _block_diag_rows(rows):
    """rows: [B, N] -> block-diagonal [B, B*N] with rows[b] placed at columns b*N:(b+1)*N."""
    n = rows.shape[1]
    return (jnp.eye(B, dtype=rows.dtype)[:, :, None] * rows[:, None, :]).reshape(B, B * n)


def ensemble_forward(params, text_ids, text_mask, images, tabular):
    # --- glue: embedding gather, im2col, pooling matrices, per-model weight stacking ---
    emb = params["emb"][:, text_ids]                                       # [M, B, S, DT]
    temb = emb.transpose(1, 2, 0, 3).reshape(B * S, NUM_MODELS * DT)       # [B*S, M*DT]

    mask_f = text_mask.astype(jnp.float32)                                 # [B, S]
    norm_mask = mask_f / (jnp.sum(mask_f, axis=1, keepdims=True) + 1e-6)
    tpool = _block_diag_rows(norm_mask)                                    # [B, B*S]

    patches_t = _im2col(images).T                                          # [CK, B*HW]
    ipool = _block_diag_rows(jnp.full((B, HW), 1.0 / HW, jnp.float32))     # [B, B*HW]

    cwt = params["conv_w"].transpose(0, 2, 1).reshape(NUM_MODELS * CIMG, CK)   # [M*CIMG, CK]
    cbt = params["conv_b"].reshape(NUM_MODELS * CIMG, 1)                       # [M*CIMG, 1]

    twst = params["tab_w"].transpose(1, 0, 2).reshape(TAB_DIM, NUM_MODELS * DTAB)  # [TAB, M*DTAB]
    tbst = params["tab_b"].reshape(1, NUM_MODELS * DTAB)                           # [1, M*DTAB]

    # fold ensemble weights into the stacked head weight / bias; reorder rows to match the
    # [text_all | img_all | tab_all] feature layout; zero-pad lanes to OUT_PAD for dense stores.
    scaled_fw = params["ens_w"][:, None, None] * params["fuse_w"]          # [M, DFEAT, C]
    fw_big = jnp.concatenate(
        [scaled_fw[:, :DT, :].reshape(NUM_MODELS * DT, NUM_CLASSES),
         scaled_fw[:, DT:DT + CIMG, :].reshape(NUM_MODELS * CIMG, NUM_CLASSES),
         scaled_fw[:, DT + CIMG:, :].reshape(NUM_MODELS * DTAB, NUM_CLASSES)],
        axis=0)                                                            # [M*DFEAT, C]
    fw_big = jnp.pad(fw_big, ((0, 0), (0, OUT_PAD - NUM_CLASSES)))         # [M*DFEAT, 128]
    fb_big = (params["ens_w"][:, None, None] * params["fuse_b"]).sum(axis=0)   # [1, C]
    fb_big = jnp.pad(fb_big, ((0, 0), (0, OUT_PAD - NUM_CLASSES)))         # [1, 128]

    vmem_specs = [pl.BlockSpec(memory_space=pltpu.MemorySpace.VMEM) for _ in range(11)]
    out_padded = pl.pallas_call(
        _ensemble_kernel,
        out_shape=jax.ShapeDtypeStruct((B, OUT_PAD), jnp.float32),
        in_specs=vmem_specs,
        out_specs=pl.BlockSpec(memory_space=pltpu.MemorySpace.VMEM),
    )(temb, tpool, patches_t, ipool, cwt, cbt, tabular, twst, tbst, fw_big, fb_big)

    return out_padded[:, :NUM_CLASSES]


# ----------------------------- pure-JAX reference -----------------------------
def ensemble_reference(params, text_ids, text_mask, images, tabular):
    mask_f = text_mask.astype(jnp.float32)
    patches = _im2col(images)
    outs = []
    for m in range(NUM_MODELS):
        emb = params["emb"][m][text_ids]                                   # [B, S, DT]
        text_feat = ((emb * mask_f[:, :, None]).sum(axis=1)
                     / (mask_f.sum(axis=1, keepdims=True) + 1e-6))
        conv = jnp.maximum(patches @ params["conv_w"][m] + params["conv_b"][m], 0.0)
        img_feat = conv.reshape(B, HW, CIMG).mean(axis=1)
        tab_feat = jnp.maximum(tabular @ params["tab_w"][m] + params["tab_b"][m], 0.0)
        fused = jnp.concatenate([text_feat, img_feat, tab_feat], axis=-1)
        outs.append(fused @ params["fuse_w"][m] + params["fuse_b"][m])
    w = params["ens_w"]
    return jnp.sum(jnp.stack([w[i] * outs[i] for i in range(NUM_MODELS)]), axis=0)


# ----------------------------- deterministic parameter init -----------------------------
def init_params(key):
    ks = jax.random.split(key, 7)
    s = 0.3
    return {
        "ens_w": (jnp.ones((NUM_MODELS,), jnp.float32) / NUM_MODELS),      # torch.ones(M)/M
        "emb":    s * jax.random.normal(ks[0], (NUM_MODELS, VOCAB, DT), jnp.float32),
        "conv_w": s * jax.random.normal(ks[1], (NUM_MODELS, CK, CIMG), jnp.float32),
        "conv_b": s * jax.random.normal(ks[2], (NUM_MODELS, 1, CIMG), jnp.float32),
        "tab_w":  s * jax.random.normal(ks[3], (NUM_MODELS, TAB_DIM, DTAB), jnp.float32),
        "tab_b":  s * jax.random.normal(ks[4], (NUM_MODELS, 1, DTAB), jnp.float32),
        "fuse_w": s * jax.random.normal(ks[5], (NUM_MODELS, DFEAT, NUM_CLASSES), jnp.float32),
        "fuse_b": s * jax.random.normal(ks[6], (NUM_MODELS, 1, NUM_CLASSES), jnp.float32),
    }


if __name__ == "__main__":
    key = jax.random.PRNGKey(0)
    kp, k1, k2, k3, k4 = jax.random.split(key, 5)
    params = init_params(kp)

    text_ids = jax.random.randint(k1, (B, S), 0, VOCAB)
    text_mask = (jax.random.uniform(k2, (B, S)) > 0.2).astype(jnp.int32)
    text_mask = text_mask.at[:, 0].set(1)            # at least one valid token per row
    images = jax.random.normal(k3, (B, CIN, H, W), jnp.float32)   # NCHW like PyTorch
    tabular = jax.random.normal(k4, (B, TAB_DIM), jnp.float32)

    out = jax.jit(ensemble_forward)(params, text_ids, text_mask, images, tabular)
    out = jax.block_until_ready(out)

    with jax.default_matmul_precision("highest"):
        ref = ensemble_reference(params, text_ids, text_mask, images, tabular)
    np.testing.assert_allclose(np.asarray(out), np.asarray(ref), rtol=5e-3, atol=1e-3)

    print("KERNEL_OK")
</pallas_src>

<mosaic_0001>
module attributes {stable_mosaic.version = 11 : i64} {
  func.func @_ensemble_kernel(%arg0: memref<16x48xf32, #tpu.memory_space<vmem>>, %arg1: memref<2x16xf32, #tpu.memory_space<vmem>>, %arg2: memref<27x128xf32, #tpu.memory_space<vmem>>, %arg3: memref<2x128xf32, #tpu.memory_space<vmem>>, %arg4: memref<24x27xf32, #tpu.memory_space<vmem>>, %arg5: memref<24x1xf32, #tpu.memory_space<vmem>>, %arg6: memref<2x8xf32, #tpu.memory_space<vmem>>, %arg7: memref<8x48xf32, #tpu.memory_space<vmem>>, %arg8: memref<1x48xf32, #tpu.memory_space<vmem>>, %arg9: memref<120x128xf32, #tpu.memory_space<vmem>>, %arg10: memref<1x128xf32, #tpu.memory_space<vmem>>, %arg11: memref<2x128xf32, #tpu.memory_space<vmem>>) attributes {dimension_semantics = [], scalar_prefetch = 0 : i64, scratch_operands = 0 : i64, tpu.core_type = #tpu.core_type<tc>} {
    %c0 = arith.constant 0 : index
    %c0_0 = arith.constant 0 : index
    %0 = vector.load %arg1[%c0, %c0_0] : memref<2x16xf32, #tpu.memory_space<vmem>>, vector<2x16xf32>
    %c0_1 = arith.constant 0 : index
    %c0_2 = arith.constant 0 : index
    %1 = vector.load %arg0[%c0_1, %c0_2] : memref<16x48xf32, #tpu.memory_space<vmem>>, vector<16x48xf32>
    %cst = arith.constant dense<0.000000e+00> : vector<2x48xf32>
    %2 = tpu.matmul %0, %1, %cst {dimension_numbers = #tpu.dot_dimension_numbers<[1], [0], [0], [1], [0, 0, 1, 1], [], []>} : vector<2x16xf32>, vector<16x48xf32>, vector<2x48xf32> -> vector<2x48xf32>
    %c0_3 = arith.constant 0 : index
    %c0_4 = arith.constant 0 : index
    %3 = vector.load %arg4[%c0_3, %c0_4] : memref<24x27xf32, #tpu.memory_space<vmem>>, vector<24x27xf32>
    %c0_5 = arith.constant 0 : index
    %c0_6 = arith.constant 0 : index
    %4 = vector.load %arg2[%c0_5, %c0_6] : memref<27x128xf32, #tpu.memory_space<vmem>>, vector<27x128xf32>
    %cst_7 = arith.constant dense<0.000000e+00> : vector<24x128xf32>
    %5 = tpu.matmul %3, %4, %cst_7 {dimension_numbers = #tpu.dot_dimension_numbers<[1], [0], [0], [1], [0, 0, 1, 1], [], []>} : vector<24x27xf32>, vector<27x128xf32>, vector<24x128xf32> -> vector<24x128xf32>
    %c0_8 = arith.constant 0 : index
    %c0_9 = arith.constant 0 : index
    %6 = vector.load %arg5[%c0_8, %c0_9] : memref<24x1xf32, #tpu.memory_space<vmem>>, vector<24x1xf32>
    %7 = vector.broadcast %6 : vector<24x1xf32> to vector<24x128xf32>
    %8 = arith.addf %5, %7 : vector<24x128xf32>
    %cst_10 = arith.constant 0.000000e+00 : f32
    %9 = vector.broadcast %cst_10 : f32 to vector<24x128xf32>
    %10 = arith.maximumf %8, %9 : vector<24x128xf32>
    %c0_11 = arith.constant 0 : index
    %c0_12 = arith.constant 0 : index
    %11 = vector.load %arg3[%c0_11, %c0_12] : memref<2x128xf32, #tpu.memory_space<vmem>>, vector<2x128xf32>
    %cst_13 = arith.constant dense<0.000000e+00> : vector<2x24xf32>
    %12 = tpu.matmul %11, %10, %cst_13 {dimension_numbers = #tpu.dot_dimension_numbers<[1], [1], [0], [0], [0, 0, 1, 0], [], []>} : vector<2x128xf32>, vector<24x128xf32>, vector<2x24xf32> -> vector<2x24xf32>
    %c0_14 = arith.constant 0 : index
    %c0_15 = arith.constant 0 : index
    %13 = vector.load %arg6[%c0_14, %c0_15] : memref<2x8xf32, #tpu.memory_space<vmem>>, vector<2x8xf32>
    %c0_16 = arith.constant 0 : index
    %c0_17 = arith.constant 0 : index
    %14 = vector.load %arg7[%c0_16, %c0_17] : memref<8x48xf32, #tpu.memory_space<vmem>>, vector<8x48xf32>
    %cst_18 = arith.constant dense<0.000000e+00> : vector<2x48xf32>
    %15 = tpu.matmul %13, %14, %cst_18 {dimension_numbers = #tpu.dot_dimension_numbers<[1], [0], [0], [1], [0, 0, 1, 1], [], []>} : vector<2x8xf32>, vector<8x48xf32>, vector<2x48xf32> -> vector<2x48xf32>
    %c0_19 = arith.constant 0 : index
    %c0_20 = arith.constant 0 : index
    %16 = vector.load %arg8[%c0_19, %c0_20] : memref<1x48xf32, #tpu.memory_space<vmem>>, vector<1x48xf32>
    %17 = vector.broadcast %16 : vector<1x48xf32> to vector<2x48xf32>
    %18 = arith.addf %15, %17 : vector<2x48xf32>
    %cst_21 = arith.constant 0.000000e+00 : f32
    %19 = vector.broadcast %cst_21 : f32 to vector<2x48xf32>
    %20 = arith.maximumf %18, %19 : vector<2x48xf32>
    %21 = tpu.concatenate %2, %12, %20 in 1 : vector<2x48xf32>, vector<2x24xf32>, vector<2x48xf32> -> vector<2x120xf32>
    %c0_22 = arith.constant 0 : index
    %c0_23 = arith.constant 0 : index
    %22 = vector.load %arg9[%c0_22, %c0_23] : memref<120x128xf32, #tpu.memory_space<vmem>>, vector<120x128xf32>
    %cst_24 = arith.constant dense<0.000000e+00> : vector<2x128xf32>
    %23 = tpu.matmul %21, %22, %cst_24 {dimension_numbers = #tpu.dot_dimension_numbers<[1], [0], [0], [1], [0, 0, 1, 1], [], []>} : vector<2x120xf32>, vector<120x128xf32>, vector<2x128xf32> -> vector<2x128xf32>
    %c0_25 = arith.constant 0 : index
    %c0_26 = arith.constant 0 : index
    %24 = vector.load %arg10[%c0_25, %c0_26] : memref<1x128xf32, #tpu.memory_space<vmem>>, vector<1x128xf32>
    %25 = vector.broadcast %24 : vector<1x128xf32> to vector<2x128xf32>
    %26 = arith.addf %23, %25 : vector<2x128xf32>
    %c0_27 = arith.constant 0 : index
    %c0_28 = arith.constant 0 : index
    %27 = vector.load %arg11[%c0_27, %c0_28] : memref<2x128xf32, #tpu.memory_space<vmem>>, vector<2x128xf32>
    tpu.vector_store %arg11[%c0_27, %c0_28], %26 {strides = array<i32>} : memref<2x128xf32, #tpu.memory_space<vmem>>, vector<2x128xf32>,
    return
  }
}

</mosaic_0001>

<llo_original>
// kernel: ensemble_forward.1
$region0: #{ensemble_forward.1}
  #allocation0 [shape = 'u32[]', space=smem, size = 0x4, offset = 0x4, fixed_abs, tag = 'smem constant byte address 0x4 - core index']
  #allocation1 [shape = 'u32[144,128]{1,0:T(1,128)}', space=vmem, size = 0x12000, scoped, tag = 'internal scratch']
  %s0 = inlined_call_operand.vmem [shape: f32[16,48], index: 0, kind: input, shape index: {}]
  %s1 = inlined_call_operand.vmem [shape: f32[2,16], index: 1, kind: input, shape index: {}]
  %s2 = inlined_call_operand.vmem [shape: f32[27,128], index: 2, kind: input, shape index: {}]
  %s3 = inlined_call_operand.vmem [shape: f32[2,128], index: 3, kind: input, shape index: {}]
  %s4 = inlined_call_operand.vmem [shape: f32[24,27], index: 4, kind: input, shape index: {}]
  %s5 = inlined_call_operand.vmem [shape: f32[24,1], index: 5, kind: input, shape index: {}]
  %s6 = inlined_call_operand.vmem [shape: f32[2,8], index: 6, kind: input, shape index: {}]
  %s7 = inlined_call_operand.vmem [shape: f32[8,48], index: 7, kind: input, shape index: {}]
  %s8 = inlined_call_operand.vmem [shape: f32[1,48], index: 8, kind: input, shape index: {}]
  %s9 = inlined_call_operand.vmem [shape: f32[120,128], index: 9, kind: input, shape index: {}]
  %s10 = inlined_call_operand.vmem [shape: f32[1,128], index: 10, kind: input, shape index: {}]
  %s11 = inlined_call_operand.hbm [shape: f32[2,128], index: 11, kind: output, shape index: {}]
  %s12 = sld [smem:[#allocation0]]
  $region54: #{ensemble_forward.1} parent=0
    _
  %s14 = ssub.s32 1, %s12
  %s15 = scalar_select 0, %s14, %s12
  $region1: #{ensemble_forward.1} parent=0
    #allocation2 [shape = 'u8[1024]{0}', space=vmem, size = 0x400, scoped, tag = 'output window, operand 0, single buffered']
    #allocation3 [shape = 's32[1]{0}', space=sflag, size = 0x4, scoped, tag = 'scoped memory for ensemble_forward.1']
    %16 = vsyncpa [#allocation3], 0
    // Predicated region
    $region2: #{ensemble_forward.1} parent=1 // pred_check
      _
    $region3: #{ensemble_forward.1} parent=1 // pred_check_branch
      %18 = sbr.rel (0) target = $region5
    $region4: #{ensemble_forward.1} parent=1 // pred_region
      _
    $region5: #{ensemble_forward.1} parent=1 // pred_fallthru
      _
    // Predicated region
    $region6: #{ensemble_forward.1} parent=1 // pred_check
      _
    $region7: #{ensemble_forward.1} parent=1 // pred_check_branch
      %20 = sbr.rel (0) target = $region9
    $region8: #{ensemble_forward.1} parent=1 // pred_region
      _
    $region9: #{ensemble_forward.1} parent=1 // pred_fallthru
      _
    // Predicated region
    $region10: #{ensemble_forward.1} parent=1 // pred_check
      _
    $region11: #{ensemble_forward.1} parent=1 // pred_check_branch
      %22 = sbr.rel (0) target = $region13
    $region12: #{ensemble_forward.1} parent=1 // pred_region
      _
    $region13: #{ensemble_forward.1} parent=1 // pred_fallthru
      _
    // Predicated region
    $region14: #{ensemble_forward.1} parent=1 // pred_check
      _
    $region15: #{ensemble_forward.1} parent=1 // pred_check_branch
      %24 = sbr.rel (0) target = $region17
    $region16: #{ensemble_forward.1} parent=1 // pred_region
      _
    $region17: #{ensemble_forward.1} parent=1 // pred_fallthru
      _
    // Predicated region
    $region18: #{ensemble_forward.1} parent=1 // pred_check
      _
    $region19: #{ensemble_forward.1} parent=1 // pred_check_branch
      %26 = sbr.rel (0) target = $region21
    $region20: #{ensemble_forward.1} parent=1 // pred_region
      _
    $region21: #{ensemble_forward.1} parent=1 // pred_fallthru
      _
    // Predicated region
    $region22: #{ensemble_forward.1} parent=1 // pred_check
      _
    $region23: #{ensemble_forward.1} parent=1 // pred_check_branch
      %28 = sbr.rel (0) target = $region25
    $region24: #{ensemble_forward.1} parent=1 // pred_region
      _
    $region25: #{ensemble_forward.1} parent=1 // pred_fallthru
      _
    // Predicated region
    $region26: #{ensemble_forward.1} parent=1 // pred_check
      _
    $region27: #{ensemble_forward.1} parent=1 // pred_check_branch
      %30 = sbr.rel (0) target = $region29
    $region28: #{ensemble_forward.1} parent=1 // pred_region
      _
    $region29: #{ensemble_forward.1} parent=1 // pred_fallthru
      _
    // Predicated region
    $region30: #{ensemble_forward.1} parent=1 // pred_check
      _
    $region31: #{ensemble_forward.1} parent=1 // pred_check_branch
      %32 = sbr.rel (0) target = $region33
    $region32: #{ensemble_forward.1} parent=1 // pred_region
      _
    $region33: #{ensemble_forward.1} parent=1 // pred_fallthru
      _
    // Predicated region
    $region34: #{ensemble_forward.1} parent=1 // pred_check
      _
    $region35: #{ensemble_forward.1} parent=1 // pred_check_branch
      %34 = sbr.rel (0) target = $region37
    $region36: #{ensemble_forward.1} parent=1 // pred_region
      _
    $region37: #{ensemble_forward.1} parent=1 // pred_fallthru
      _
    // Predicated region
    $region38: #{ensemble_forward.1} parent=1 // pred_check
      _
    $region39: #{ensemble_forward.1} parent=1 // pred_check_branch
      %36 = sbr.rel (0) target = $region41
    $region40: #{ensemble_forward.1} parent=1 // pred_region
      _
    $region41: #{ensemble_forward.1} parent=1 // pred_fallthru
      _
    // Predicated region
    $region42: #{ensemble_forward.1} parent=1 // pred_check
      _
    $region43: #{ensemble_forward.1} parent=1 // pred_check_branch
      %38 = sbr.rel (0) target = $region45
    $region44: #{ensemble_forward.1} parent=1 // pred_region
      _
    $region45: #{ensemble_forward.1} parent=1 // pred_fallthru
      _
    %v39 = vld [vmem:[%s1] sm:$0x3]
    %v40 = vld [vmem:[%s0] sm:$0xff]
    %v41 = vld [vmem:[%s0 + $0x8] sm:$0xff]
    %vm42 = vcmask 130048
    %v44 = vsel %vm42, %v39, 0
    %46 = vmatprep.subr.mxu0 0.0
    %47 = vmatpush1.msra.mxu0 %v40
    %48 = vmatprep.subr.mxu0 0.0
    %49 = vmatpush1.msra.mxu0 %v41
    %50 = vmatprep.subr.mxu0 0.0
    %51 = vmatpush1.msra.mxu0 0.0
    %52 = vmatprep.subr.mxu0 0.0
    %53 = vmatpush1.msra.mxu0 0.0
    %54 = vmatprep.subr.mxu0 0.0
    %55 = vmatpush1.msra.mxu0 0.0
    %56 = vmatprep.subr.mxu0 0.0
    %57 = vmatpush1.msra.mxu0 0.0
    %58 = vmatprep.subr.mxu0 0.0
    %59 = vmatpush1.msra.mxu0 0.0
    %60 = vmatprep.subr.mxu0 0.0
    %61 = vmatpush1.msra.mxu0 0.0
    %62 = vmatprep.subr.mxu0 0.0
    %63 = vmatpush1.msra.mxu0 0.0
    %64 = vmatprep.subr.mxu0 0.0
    %65 = vmatpush1.msra.mxu0 0.0
    %66 = vmatprep.subr.mxu0 0.0
    %67 = vmatpush1.msra.mxu0 0.0
    %68 = vmatprep.subr.mxu0 0.0
    %69 = vmatpush1.msra.mxu0 0.0
    %70 = vmatprep.subr.mxu0 0.0
    %71 = vmatpush1.msra.mxu0 0.0
    %72 = vmatprep.subr.mxu0 0.0
    %73 = vmatpush1.msra.mxu0 0.0
    %74 = vmatprep.subr.mxu0 0.0
    %75 = vmatpush1.msra.mxu0 0.0
    %76 = vmatprep.subr.mxu0 0.0
    %77 = vmatpush1.msra.mxu0 0.0
    %78 = vmatprep.subr.mxu0 0.0
    %79 = vmatpush1.msra.mxu0 0.0
    %80 = vmatprep.subr.mxu0 0.0
    %81 = vmatpush1.msra.mxu0 0.0
    %82 = vmatprep.subr.mxu0 0.0
    %83 = vmatpush1.msra.mxu0 0.0
    %84 = vmatprep.subr.mxu0 0.0
    %85 = vmatpush1.msra.mxu0 0.0
    %86 = vmatprep.subr.mxu0 0.0
    %87 = vmatpush1.msra.mxu0 0.0
    %88 = vmatprep.subr.mxu0 0.0
    %89 = vmatpush1.msra.mxu0 0.0
    %90 = vmatprep.subr.mxu0 0.0
    %91 = vmatpush1.msra.mxu0 0.0
    %92 = vmatprep.subr.mxu0 0.0
    %93 = vmatpush1.msra.mxu0 0.0
    %94 = vmatprep.subr.mxu0 0.0
    %95 = vmatpush1.msra.mxu0 0.0
    %96 = vmatprep.subr.mxu0 0.0
    %97 = vmatpush1.msra.mxu0 0.0
    %98 = vmatprep.subr.mxu0 0.0
    %99 = vmatpush1.msra.mxu0 0.0
    %100 = vmatprep.subr.mxu0 0.0
    %101 = vmatpush1.msra.mxu0 0.0
    %102 = vmatprep.subr.mxu0 0.0
    %103 = vmatpush1.msra.mxu0 0.0
    %104 = vmatprep.subr.mxu0 0.0
    %105 = vmatpush1.msra.mxu0 0.0
    %106 = vmatprep.subr.mxu0 0.0
    %107 = vmatpush1.msra.mxu0 0.0
    %108 = vmatprep.subr.mxu0 0.0
    %109 = vmatpush1.msra.mxu0 0.0
    %110 = vmatprep.mubr.f32.mxu0 0.0
    %111 = vmatmul.mubr.f32.gmra.mrb[0].mxu0 %v44
    %v112 = vpop.f32.mrb[0].mxu0
    %v113 = vadd.f32 0.0, %v112
    %v114 = vpop.f32.mrb[0].mxu0
    %115 = vdwg.mxu0
    %v116 = vld [vmem:[%s4] sm:$0xff]
    %v117 = vld [vmem:[%s4 + $0x8] sm:$0xff]
    %v118 = vld [vmem:[%s4 + $0x10] sm:$0xff]
    %v119 = vld [vmem:[%s2] sm:$0xff]
    %v120 = vld [vmem:[%s2 + $0x8] sm:$0xff]
    %v121 = vld [vmem:[%s2 + $0x10] sm:$0xff]
    %v122 = vld [vmem:[%s2 + $0x18] sm:$0x7]
    %v123 = vld [vmem:[%s5] sm:$0xff]
    %v124 = vld [vmem:[%s5 + $0x8] sm:$0xff]
    %v125 = vld [vmem:[%s5 + $0x10] sm:$0xff]
    %127 = vset.pattern.permute.xlu0 0
    %128 = vperm.xlu0 %127, %v123
    %v129 = vpop.permute.xlu0 %128
    %132 = vset.pattern.permute.xlu0 0
    %133 = vperm.xlu0 %132, %v124
    %v134 = vpop.permute.xlu0 %133
    %137 = vset.pattern.permute.xlu0 0
    %138 = vperm.xlu0 %137, %v125
    %v139 = vpop.permute.xlu0 %138
    %vm141 = vcmask 220160
    %v143 = vsel %vm141, %v116, 0
    %v146 = vsel %vm141, %v117, 0
    %v149 = vsel %vm141, %v118, 0
    %vm151 = vcmask 1042432
    %v153 = vsel %vm151, %v122, 0
    %155 = vmatprep.subr.mxu0 0.0
    %156 = vmatpush1.msra.mxu0 %v119
    %157 = vmatprep.subr.mxu0 0.0
    %158 = vmatpush1.msra.mxu0 %v120
    %159 = vmatprep.subr.mxu0 0.0
    %160 = vmatpush1.msra.mxu0 %v121
    %161 = vmatprep.subr.mxu0 0.0
    %162 = vmatpush1.msra.mxu0 %v153
    %163 = vmatprep.subr.mxu0 0.0
    %164 = vmatpush1.msra.mxu0 0.0
    %165 = vmatprep.subr.mxu0 0.0
    %166 = vmatpush1.msra.mxu0 0.0
    %167 = vmatprep.subr.mxu0 0.0
    %168 = vmatpush1.msra.mxu0 0.0
    %169 = vmatprep.subr.mxu0 0.0
    %170 = vmatpush1.msra.mxu0 0.0
    %171 = vmatprep.subr.mxu0 0.0
    %172 = vmatpush1.msra.mxu0 0.0
    %173 = vmatprep.subr.mxu0 0.0
    %174 = vmatpush1.msra.mxu0 0.0
    %175 = vmatprep.subr.mxu0 0.0
    %176 = vmatpush1.msra.mxu0 0.0
    %177 = vmatprep.subr.mxu0 0.0
    %178 = vmatpush1.msra.mxu0 0.0
    %179 = vmatprep.subr.mxu0 0.0
    %180 = vmatpush1.msra.mxu0 0.0
    %181 = vmatprep.subr.mxu0 0.0
    %182 = vmatpush1.msra.mxu0 0.0
    %183 = vmatprep.subr.mxu0 0.0
    %184 = vmatpush1.msra.mxu0 0.0
    %185 = vmatprep.subr.mxu0 0.0
    %186 = vmatpush1.msra.mxu0 0.0
    %187 = vmatprep.subr.mxu0 0.0
    %188 = vmatpush1.msra.mxu0 0.0
    %189 = vmatprep.subr.mxu0 0.0
    %190 = vmatpush1.msra.mxu0 0.0
    %191 = vmatprep.subr.mxu0 0.0
    %192 = vmatpush1.msra.mxu0 0.0
    %193 = vmatprep.subr.mxu0 0.0
    %194 = vmatpush1.msra.mxu0 0.0
    %195 = vmatprep.subr.mxu0 0.0
    %196 = vmatpush1.msra.mxu0 0.0
    %197 = vmatprep.subr.mxu0 0.0
    %198 = vmatpush1.msra.mxu0 0.0
    %199 = vmatprep.subr.mxu0 0.0
    %200 = vmatpush1.msra.mxu0 0.0
    %201 = vmatprep.subr.mxu0 0.0
    %202 = vmatpush1.msra.mxu0 0.0
    %203 = vmatprep.subr.mxu0 0.0
    %204 = vmatpush1.msra.mxu0 0.0
    %205 = vmatprep.subr.mxu0 0.0
    %206 = vmatpush1.msra.mxu0 0.0
    %207 = vmatprep.subr.mxu0 0.0
    %208 = vmatpush1.msra.mxu0 0.0
    %209 = vmatprep.subr.mxu0 0.0
    %210 = vmatpush1.msra.mxu0 0.0
    %211 = vmatprep.subr.mxu0 0.0
    %212 = vmatpush1.msra.mxu0 0.0
    %213 = vmatprep.subr.mxu0 0.0
    %214 = vmatpush1.msra.mxu0 0.0
    %215 = vmatprep.subr.mxu0 0.0
    %216 = vmatpush1.msra.mxu0 0.0
    %217 = vmatprep.subr.mxu0 0.0
    %218 = vmatpush1.msra.mxu0 0.0
    %219 = vmatprep.mubr.f32.mxu0 0.0
    %220 = vmatmul.mubr.f32.gmra.mrb[0].mxu0 %v143
    %v221 = vpop.f32.mrb[0].mxu0
    %v222 = vadd.f32 %v129, %v221
    %v223 = vpop.f32.mrb[0].mxu0
    %224 = vmatprep.mubr.f32.mxu0 0.0
    %225 = vmatmul.mubr.f32.gmra.mrb[0].mxu0 %v146
    %v226 = vpop.f32.mrb[0].mxu0
    %v227 = vadd.f32 %v134, %v226
    %v228 = vpop.f32.mrb[0].mxu0
    %229 = vmatprep.mubr.f32.mxu0 0.0
    %230 = vmatmul.mubr.f32.gmra.mrb[0].mxu0 %v149
    %v231 = vpop.f32.mrb[0].mxu0
    %v232 = vadd.f32 %v139, %v231
    %v233 = vpop.f32.mrb[0].mxu0
    %234 = vdwg.mxu0
    %v235 = vmax.f32 %v222, 0.0
    %v236 = vmax.f32 %v227, 0.0
    %v237 = vmax.f32 %v232, 0.0
    %v238 = vld [vmem:[%s3] sm:$0x3]
    %239 = vmatprep.subr.mxu0 0.0
    %240 = vmatpush1.xpose.msra.mxu0 %v235
    %241 = vmatprep.subr.mxu0 0.0
    %242 = vmatpush1.xpose.msra.mxu0 %v236
    %243 = vmatprep.subr.mxu0 0.0
    %244 = vmatpush1.xpose.msra.mxu0 %v237
    %245 = vmatprep.subr.mxu0 0.0
    %246 = vmatpush1.xpose.msra.mxu0 0.0
    %247 = vmatprep.subr.mxu0 0.0
    %248 = vmatpush1.xpose.msra.mxu0 0.0
    %249 = vmatprep.subr.mxu0 0.0
    %250 = vmatpush1.xpose.msra.mxu0 0.0
    %251 = vmatprep.subr.mxu0 0.0
    %252 = vmatpush1.xpose.msra.mxu0 0.0
    %253 = vmatprep.subr.mxu0 0.0
    %254 = vmatpush1.xpose.msra.mxu0 0.0
    %255 = vmatprep.subr.mxu0 0.0
    %256 = vmatpush1.xpose.msra.mxu0 0.0
    %257 = vmatprep.subr.mxu0 0.0
    %258 = vmatpush1.xpose.msra.mxu0 0.0
    %259 = vmatprep.subr.mxu0 0.0
    %260 = vmatpush1.xpose.msra.mxu0 0.0
    %261 = vmatprep.subr.mxu0 0.0
    %262 = vmatpush1.xpose.msra.mxu0 0.0
    %263 = vmatprep.subr.mxu0 0.0
    %264 = vmatpush1.xpose.msra.mxu0 0.0
    %265 = vmatprep.subr.mxu0 0.0
    %266 = vmatpush1.xpose.msra.mxu0 0.0
    %267 = vmatprep.subr.mxu0 0.0
    %268 = vmatpush1.xpose.msra.mxu0 0.0
    %269 = vmatprep.subr.mxu0 0.0
    %270 = vmatpush1.xpose.msra.mxu0 0.0
    %271 = vmatprep.subr.mxu0 0.0
    %272 = vmatpush1.xpose.msra.mxu0 0.0
    %273 = vmatprep.subr.mxu0 0.0
    %274 = vmatpush1.xpose.msra.mxu0 0.0
    %275 = vmatprep.subr.mxu0 0.0
    %276 = vmatpush1.xpose.msra.mxu0 0.0
    %277 = vmatprep.subr.mxu0 0.0
    %278 = vmatpush1.xpose.msra.mxu0 0.0
    %279 = vmatprep.subr.mxu0 0.0
    %280 = vmatpush1.xpose.msra.mxu0 0.0
    %281 = vmatprep.subr.mxu0 0.0
    %282 = vmatpush1.xpose.msra.mxu0 0.0
    %283 = vmatprep.subr.mxu0 0.0
    %284 = vmatpush1.xpose.msra.mxu0 0.0
    %285 = vmatprep.subr.mxu0 0.0
    %286 = vmatpush1.xpose.msra.mxu0 0.0
    %287 = vmatprep.subr.mxu0 0.0
    %288 = vmatpush1.xpose.msra.mxu0 0.0
    %289 = vmatprep.subr.mxu0 0.0
    %290 = vmatpush1.xpose.msra.mxu0 0.0
    %291 = vmatprep.subr.mxu0 0.0
    %292 = vmatpush1.xpose.msra.mxu0 0.0
    %293 = vmatprep.subr.mxu0 0.0
    %294 = vmatpush1.xpose.msra.mxu0 0.0
    %295 = vmatprep.subr.mxu0 0.0
    %296 = vmatpush1.xpose.msra.mxu0 0.0
    %297 = vmatprep.subr.mxu0 0.0
    %298 = vmatpush1.xpose.msra.mxu0 0.0
    %299 = vmatprep.subr.mxu0 0.0
    %300 = vmatpush1.xpose.msra.mxu0 0.0
    %301 = vmatprep.subr.mxu0 0.0
    %302 = vmatpush1.xpose.msra.mxu0 0.0
    %303 = vmatprep.mubr.f32.mxu0 0.0
    %304 = vmatmul.mubr.f32.gmra.mrb[0].mxu0 %v238
    %v305 = vpop.f32.mrb[0].mxu0
    %v306 = vadd.f32 0.0, %v305
    %v307 = vpop.f32.mrb[0].mxu0
    %308 = vdwg.mxu0
    %v309 = vld [vmem:[%s6] sm:$0x3]
    %v310 = vld [vmem:[%s7] sm:$0xff]
    %v311 = vld [vmem:[%s8] sm:$0x1]
    %v313 = vlaneseq
    %v314 = vshrl.u32 %v313, 7
    %v315 = vsub.s32 0, %v314
    %v316 = vrot.slane %v311, %v315
    %vm318 = vcmask 64512
    %v320 = vsel %vm318, %v309, 0
    %322 = vmatprep.subr.mxu0 0.0
    %323 = vmatpush1.msra.mxu0 %v310
    %324 = vmatprep.subr.mxu0 0.0
    %325 = vmatpush1.msra.mxu0 0.0
    %326 = vmatprep.subr.mxu0 0.0
    %327 = vmatpush1.msra.mxu0 0.0
    %328 = vmatprep.subr.mxu0 0.0
    %329 = vmatpush1.msra.mxu0 0.0
    %330 = vmatprep.subr.mxu0 0.0
    %331 = vmatpush1.msra.mxu0 0.0
    %332 = vmatprep.subr.mxu0 0.0
    %333 = vmatpush1.msra.mxu0 0.0
    %334 = vmatprep.subr.mxu0 0.0
    %335 = vmatpush1.msra.mxu0 0.0
    %336 = vmatprep.subr.mxu0 0.0
    %337 = vmatpush1.msra.mxu0 0.0
    %338 = vmatprep.subr.mxu0 0.0
    %339 = vmatpush1.msra.mxu0 0.0
    %340 = vmatprep.subr.mxu0 0.0
    %341 = vmatpush1.msra.mxu0 0.0
    %342 = vmatprep.subr.mxu0 0.0
    %343 = vmatpush1.msra.mxu0 0.0
    %344 = vmatprep.subr.mxu0 0.0
    %345 = vmatpush1.msra.mxu0 0.0
    %346 = vmatprep.subr.mxu0 0.0
    %347 = vmatpush1.msra.mxu0 0.0
    %348 = vmatprep.subr.mxu0 0.0
    %349 = vmatpush1.msra.mxu0 0.0
    %350 = vmatprep.subr.mxu0 0.0
    %351 = vmatpush1.msra.mxu0 0.0
    %352 = vmatprep.subr.mxu0 0.0
    %353 = vmatpush1.msra.mxu0 0.0
    %354 = vmatprep.subr.mxu0 0.0
    %355 = vmatpush1.msra.mxu0 0.0
    %356 = vmatprep.subr.mxu0 0.0
    %357 = vmatpush1.msra.mxu0 0.0
    %358 = vmatprep.subr.mxu0 0.0
    %359 = vmatpush1.msra.mxu0 0.0
    %360 = vmatprep.subr.mxu0 0.0
    %361 = vmatpush1.msra.mxu0 0.0
    %362 = vmatprep.subr.mxu0 0.0
    %363 = vmatpush1.msra.mxu0 0.0
    %364 = vmatprep.subr.mxu0 0.0
    %365 = vmatpush1.msra.mxu0 0.0
    %366 = vmatprep.subr.mxu0 0.0
    %367 = vmatpush1.msra.mxu0 0.0
    %368 = vmatprep.subr.mxu0 0.0
    %369 = vmatpush1.msra.mxu0 0.0
    %370 = vmatprep.subr.mxu0 0.0
    %371 = vmatpush1.msra.mxu0 0.0
    %372 = vmatprep.subr.mxu0 0.0
    %373 = vmatpush1.msra.mxu0 0.0
    %374 = vmatprep.subr.mxu0 0.0
    %375 = vmatpush1.msra.mxu0 0.0
    %376 = vmatprep.subr.mxu0 0.0
    %377 = vmatpush1.msra.mxu0 0.0
    %378 = vmatprep.subr.mxu0 0.0
    %379 = vmatpush1.msra.mxu0 0.0
    %380 = vmatprep.subr.mxu0 0.0
    %381 = vmatpush1.msra.mxu0 0.0
    %382 = vmatprep.subr.mxu0 0.0
    %383 = vmatpush1.msra.mxu0 0.0
    %384 = vmatprep.subr.mxu0 0.0
    %385 = vmatpush1.msra.mxu0 0.0
    %386 = vmatprep.mubr.f32.mxu0 0.0
    %387 = vmatmul.mubr.f32.gmra.mrb[0].mxu0 %v320
    %v388 = vpop.f32.mrb[0].mxu0
    %v389 = vadd.f32 %v316, %v388
    %v390 = vpop.f32.mrb[0].mxu0
    %391 = vdwg.mxu0
    %v392 = vmax.f32 %v389, 0.0
    %394 = vrot.lane.b32.xlu0 %v306, 48
    %v395 = vpop.permute.xlu0 %394
    %398 = vrot.lane.b32.xlu0 %v392, 72
    %v399 = vpop.permute.xlu0 %398
    %vm401 = vcmask 392192
    %v402 = vsel %vm401, %v113, %v395
    %vm403 = vcmask 588800
    %v404 = vsel %vm403, %v402, %v399
    %v405 = vld [vmem:[%s9] sm:$0xff]
    %v406 = vld [vmem:[%s9 + $0x8] sm:$0xff]
    %v407 = vld [vmem:[%s9 + $0x10] sm:$0xff]
    %v408 = vld [vmem:[%s9 + $0x18] sm:$0xff]
    %v409 = vld [vmem:[%s9 + $0x20] sm:$0xff]
    %v410 = vld [vmem:[%s9 + $0x28] sm:$0xff]
    %v411 = vld [vmem:[%s9 + $0x30] sm:$0xff]
    %v412 = vld [vmem:[%s9 + $0x38] sm:$0xff]
    %v413 = vld [vmem:[%s9 + $0x40] sm:$0xff]
    %v414 = vld [vmem:[%s9 + $0x48] sm:$0xff]
    %v415 = vld [vmem:[%s9 + $0x50] sm:$0xff]
    %v416 = vld [vmem:[%s9 + $0x58] sm:$0xff]
    %v417 = vld [vmem:[%s9 + $0x60] sm:$0xff]
    %v418 = vld [vmem:[%s9 + $0x68] sm:$0xff]
    %v419 = vld [vmem:[%s9 + $0x70] sm:$0xff]
    %v420 = vld [vmem:[%s10] sm:$0x1]
    %v422 = vlaneseq
    %v423 = vshrl.u32 %v422, 7
    %v424 = vsub.s32 0, %v423
    %v425 = vrot.slane %v420, %v424
    %vm427 = vcmask 982016
    %v429 = vsel %vm427, %v404, 0
    %431 = vmatprep.subr.mxu0 0.0
    %432 = vmatpush1.msra.mxu0 %v405
    %433 = vmatprep.subr.mxu0 0.0
    %434 = vmatpush1.msra.mxu0 %v406
    %435 = vmatprep.subr.mxu0 0.0
    %436 = vmatpush1.msra.mxu0 %v407
    %437 = vmatprep.subr.mxu0 0.0
    %438 = vmatpush1.msra.mxu0 %v408
    %439 = vmatprep.subr.mxu0 0.0
    %440 = vmatpush1.msra.mxu0 %v409
    %441 = vmatprep.subr.mxu0 0.0
    %442 = vmatpush1.msra.mxu0 %v410
    %443 = vmatprep.subr.mxu0 0.0
    %444 = vmatpush1.msra.mxu0 %v411
    %445 = vmatprep.subr.mxu0 0.0
    %446 = vmatpush1.msra.mxu0 %v412
    %447 = vmatprep.subr.mxu0 0.0
    %448 = vmatpush1.msra.mxu0 %v413
    %449 = vmatprep.subr.mxu0 0.0
    %450 = vmatpush1.msra.mxu0 %v414
    %451 = vmatprep.subr.mxu0 0.0
    %452 = vmatpush1.msra.mxu0 %v415
    %453 = vmatprep.subr.mxu0 0.0
    %454 = vmatpush1.msra.mxu0 %v416
    %455 = vmatprep.subr.mxu0 0.0
    %456 = vmatpush1.msra.mxu0 %v417
    %457 = vmatprep.subr.mxu0 0.0
    %458 = vmatpush1.msra.mxu0 %v418
    %459 = vmatprep.subr.mxu0 0.0
    %460 = vmatpush1.msra.mxu0 %v419
    %461 = vmatprep.subr.mxu0 0.0
    %462 = vmatpush1.msra.mxu0 0.0
    %463 = vmatprep.subr.mxu0 0.0
    %464 = vmatpush1.msra.mxu0 0.0
    %465 = vmatprep.subr.mxu0 0.0
    %466 = vmatpush1.msra.mxu0 0.0
    %467 = vmatprep.subr.mxu0 0.0
    %468 = vmatpush1.msra.mxu0 0.0
    %469 = vmatprep.subr.mxu0 0.0
    %470 = vmatpush1.msra.mxu0 0.0
    %471 = vmatprep.subr.mxu0 0.0
    %472 = vmatpush1.msra.mxu0 0.0
    %473 = vmatprep.subr.mxu0 0.0
    %474 = vmatpush1.msra.mxu0 0.0
    %475 = vmatprep.subr.mxu0 0.0
    %476 = vmatpush1.msra.mxu0 0.0
    %477 = vmatprep.subr.mxu0 0.0
    %478 = vmatpush1.msra.mxu0 0.0
    %479 = vmatprep.subr.mxu0 0.0
    %480 = vmatpush1.msra.mxu0 0.0
    %481 = vmatprep.subr.mxu0 0.0
    %482 = vmatpush1.msra.mxu0 0.0
    %483 = vmatprep.subr.mxu0 0.0
    %484 = vmatpush1.msra.mxu0 0.0
    %485 = vmatprep.subr.mxu0 0.0
    %486 = vmatpush1.msra.mxu0 0.0
    %487 = vmatprep.subr.mxu0 0.0
    %488 = vmatpush1.msra.mxu0 0.0
    %489 = vmatprep.subr.mxu0 0.0
    %490 = vmatpush1.msra.mxu0 0.0
    %491 = vmatprep.subr.mxu0 0.0
    %492 = vmatpush1.msra.mxu0 0.0
    %493 = vmatprep.subr.mxu0 0.0
    %494 = vmatpush1.msra.mxu0 0.0
    %495 = vmatprep.mubr.f32.mxu0 0.0
    %496 = vmatmul.mubr.f32.gmra.mrb[0].mxu0 %v429
    %v497 = vpop.f32.mrb[0].mxu0
    %v498 = vadd.f32 %v425, %v497
    %v499 = vpop.f32.mrb[0].mxu0
    %500 = vdwg.mxu0
    %501 = vst [vmem:[#allocation2] sm:$0x3] %v498
    // Predicated region
    $region46: #{ensemble_forward.1} parent=1 // pred_check
      _
    $region47: #{ensemble_forward.1} parent=1 // pred_check_branch
      %503 = sbr.rel (0) target = $region49
    $region48: #{ensemble_forward.1} parent=1 // pred_region
      %s505 = ssub.s32 32, 32
      %506 = vsyncadd [#allocation3], %s505
      %s508 = sshll.u32 [#allocation2], 4
      %s509 = int_to_ptr.vmem [resolvable:$true] %s508
      %511 = dma.vmem_to_hbm [thread:$0]  %s509, 32, %s11, [#allocation3]
    $region49: #{ensemble_forward.1} parent=1 // pred_fallthru
      _
    // Predicated region
    $region50: #{ensemble_forward.1} parent=1 // pred_check
      _
    $region51: #{ensemble_forward.1} parent=1 // pred_check_branch
      %513 = sbr.rel (0) target = $region53
    $region52: #{ensemble_forward.1} parent=1 // pred_region
      %514 = dma.done [#allocation3], 32
    $region53: #{ensemble_forward.1} parent=1 // pred_fallthru
      _
    %515 = vsyncpa [#allocation3], 1

</llo_original>
